<compile_context>
chip_gen: v6e
topology: v6e:2x2x1
jax: 0.10.0
libtpu: 0.0.40
codegen_flags: <defaults>
</compile_context>

<pallas_src>
import jax
import jax.numpy as jnp
from jax.experimental import pallas as pl
from jax.experimental.pallas import tpu as pltpu


def mlp_kernel(x_ref,
               w1_ref, b1_ref,
               w2_ref, b2_ref,
               w3_ref, b3_ref,
               w4_ref, b4_ref,
               o_ref):
    """One batch tile, transposed layout: x_ref is (size, batch_tile).

    h_k = relu(W_k @ h_{k-1} + b_k) for k=1..3; out = sigmoid(W4 @ h3 + b4).
    All intermediates keep batch on the lane axis -> lane-dense VPU work and a
    lane-dense (1, batch_tile) store at the end.
    """
    h = jnp.dot(w1_ref[...], x_ref[...], preferred_element_type=jnp.float32)
    h = jnp.maximum(h + b1_ref[...], 0.0)

    h = jnp.dot(w2_ref[...], h, preferred_element_type=jnp.float32)
    h = jnp.maximum(h + b2_ref[...], 0.0)

    h = jnp.dot(w3_ref[...], h, preferred_element_type=jnp.float32)
    h = jnp.maximum(h + b3_ref[...], 0.0)

    logits = jnp.dot(w4_ref[...], h, preferred_element_type=jnp.float32) + b4_ref[...]
    o_ref[...] = jax.nn.sigmoid(logits).astype(o_ref.dtype)   # (1, batch_tile)


def _pick_grid_steps(B):
    """1 grid step on single-TC chips (v5e/v6e); 2 steps (one per TC) on v7x."""
    steps = 1
    try:
        if "7" in jax.devices()[0].device_kind:   # e.g. "TPU7x" / "TPU v7x"
            steps = 2
    except Exception:
        pass
    # Fall back to a single full-batch step if B can't be split into 128-lane tiles.
    if steps > 1 and (B % steps != 0 or (B // steps) % 128 != 0):
        steps = 1
    return steps


def mlp_forward(x, params, *, grid_steps=None):
    """Fused MLP forward.  Output shape (B, 1), matching the PyTorch module."""
    w1, b1, w2, b2, w3, b3, w4, b4 = params
    B, size = x.shape
    n1, n2, n3 = w1.shape[0], w2.shape[0], w3.shape[0]

    if grid_steps is None:
        grid_steps = _pick_grid_steps(B)
    assert B % grid_steps == 0
    batch_tile = B // grid_steps
    assert grid_steps == 1 or batch_tile % 128 == 0, \
        "multi-step tiling needs batch_tile to be a multiple of 128 lanes"

    # Batch on the lane axis.  This transpose is wrapper-side layout plumbing only.
    x_t = x.T                                   # (size, B)

    # Weights / biases (~19 KB total) stay fully resident; constant index maps mean
    # Pallas does not re-DMA them across grid steps.
    full = lambda shp: pl.BlockSpec(shp, lambda i: (0,) * len(shp))

    out = pl.pallas_call(
        mlp_kernel,
        out_shape=jax.ShapeDtypeStruct((1, B), jnp.float32),
        grid=(grid_steps,),
        in_specs=[
            pl.BlockSpec((size, batch_tile), lambda i: (0, i)),   # x tile (lane-dense)
            full((n1, size)), full((n1, 1)),
            full((n2, n1)),   full((n2, 1)),
            full((n3, n2)),   full((n3, 1)),
            full((1, n3)),    full((1, 1)),
        ],
        out_specs=pl.BlockSpec((1, batch_tile), lambda i: (0, i)),  # lane-dense store
        compiler_params=pltpu.CompilerParams(
            dimension_semantics=("parallel",)),   # splits the 2 steps across TCs on v7x
    )(x_t, w1, b1, w2, b2, w3, b3, w4, b4)

    return out.reshape(B, 1)


def init_params(key, size, n_1, n_2, n_3):
    """Deterministic init mimicking nn.Linear (uniform +/- 1/sqrt(fan_in)).

    All weights kept in PyTorch layout [out, in]; biases stored as [out, 1] columns
    so they broadcast over the lane (batch) axis inside the kernel."""
    dims = [(size, n_1), (n_1, n_2), (n_2, n_3), (n_3, 1)]
    params = []
    for fan_in, fan_out in dims:
        key, kw, kb = jax.random.split(key, 3)
        bound = 1.0 / jnp.sqrt(jnp.float32(fan_in))
        w = jax.random.uniform(kw, (fan_out, fan_in), jnp.float32, -bound, bound)
        b = jax.random.uniform(kb, (fan_out, 1), jnp.float32, -bound, bound)
        params += [w, b]
    return params


def mlp_ref(x, params):
    """Pure-JAX reference matching the PyTorch forward."""
    w1, b1, w2, b2, w3, b3, w4, b4 = params
    h = jnp.maximum(x @ w1.T + b1.T, 0.0)
    h = jnp.maximum(h @ w2.T + b2.T, 0.0)
    h = jnp.maximum(h @ w3.T + b3.T, 0.0)
    return jax.nn.sigmoid(h @ w4.T + b4.T)


if __name__ == "__main__":
    size, n_1, n_2, n_3 = 32, 64, 32, 16
    B = 512

    key = jax.random.PRNGKey(0)
    key, kx = jax.random.split(key)
    x = jax.random.normal(kx, (B, size), jnp.float32)
    params = init_params(key, size, n_1, n_2, n_3)

    out = mlp_forward(x, params)
    out = jax.block_until_ready(out)

    ref = mlp_ref(x, params)
    assert out.shape == (B, 1)
    assert jnp.allclose(out, ref, atol=1e-5, rtol=1e-5)

    print("KERNEL_OK")
</pallas_src>

<mosaic_0001>
module attributes {stable_mosaic.version = 11 : i64} {
  func.func @mlp_kernel(%arg0: i32, %arg1: memref<32x512xf32, #tpu.memory_space<vmem>>, %arg2: memref<64x32xf32, #tpu.memory_space<vmem>>, %arg3: memref<64x1xf32, #tpu.memory_space<vmem>>, %arg4: memref<32x64xf32, #tpu.memory_space<vmem>>, %arg5: memref<32x1xf32, #tpu.memory_space<vmem>>, %arg6: memref<16x32xf32, #tpu.memory_space<vmem>>, %arg7: memref<16x1xf32, #tpu.memory_space<vmem>>, %arg8: memref<1x16xf32, #tpu.memory_space<vmem>>, %arg9: memref<1x1xf32, #tpu.memory_space<vmem>>, %arg10: memref<1x512xf32, #tpu.memory_space<vmem>>) attributes {dimension_semantics = [#tpu.dimension_semantics<parallel>], iteration_bounds = array<i64: 1>, scalar_prefetch = 0 : i64, scratch_operands = 0 : i64, tpu.core_type = #tpu.core_type<tc>, window_params = [{transform_indices = @transform_0, window_bounds = array<i64: 32, 512>}, {pipeline_mode = #tpu.pipeline_mode<synchronous>, transform_indices = @transform_1, window_bounds = array<i64: 64, 32>}, {pipeline_mode = #tpu.pipeline_mode<synchronous>, transform_indices = @transform_2, window_bounds = array<i64: 64, 1>}, {pipeline_mode = #tpu.pipeline_mode<synchronous>, transform_indices = @transform_3, window_bounds = array<i64: 32, 64>}, {pipeline_mode = #tpu.pipeline_mode<synchronous>, transform_indices = @transform_4, window_bounds = array<i64: 32, 1>}, {pipeline_mode = #tpu.pipeline_mode<synchronous>, transform_indices = @transform_5, window_bounds = array<i64: 16, 32>}, {pipeline_mode = #tpu.pipeline_mode<synchronous>, transform_indices = @transform_6, window_bounds = array<i64: 16, 1>}, {pipeline_mode = #tpu.pipeline_mode<synchronous>, transform_indices = @transform_7, window_bounds = array<i64: 1, 16>}, {pipeline_mode = #tpu.pipeline_mode<synchronous>, transform_indices = @transform_8, window_bounds = array<i64: 1, 1>}, {transform_indices = @transform_9, window_bounds = array<i64: 1, 512>}]} {
    %c0 = arith.constant 0 : index
    %c0_0 = arith.constant 0 : index
    %0 = vector.load %arg2[%c0, %c0_0] : memref<64x32xf32, #tpu.memory_space<vmem>>, vector<64x32xf32>
    %c0_1 = arith.constant 0 : index
    %c0_2 = arith.constant 0 : index
    %1 = vector.load %arg1[%c0_1, %c0_2] : memref<32x512xf32, #tpu.memory_space<vmem>>, vector<32x512xf32>
    %cst = arith.constant dense<0.000000e+00> : vector<64x512xf32>
    %2 = tpu.matmul %0, %1, %cst {dimension_numbers = #tpu.dot_dimension_numbers<[1], [0], [0], [1], [0, 0, 1, 1], [], []>} : vector<64x32xf32>, vector<32x512xf32>, vector<64x512xf32> -> vector<64x512xf32>
    %c0_3 = arith.constant 0 : index
    %c0_4 = arith.constant 0 : index
    %3 = vector.load %arg3[%c0_3, %c0_4] : memref<64x1xf32, #tpu.memory_space<vmem>>, vector<64x1xf32>
    %4 = vector.broadcast %3 : vector<64x1xf32> to vector<64x512xf32>
    %5 = arith.addf %2, %4 : vector<64x512xf32>
    %cst_5 = arith.constant 0.000000e+00 : f32
    %6 = vector.broadcast %cst_5 : f32 to vector<64x512xf32>
    %7 = arith.maximumf %5, %6 : vector<64x512xf32>
    %c0_6 = arith.constant 0 : index
    %c0_7 = arith.constant 0 : index
    %8 = vector.load %arg4[%c0_6, %c0_7] : memref<32x64xf32, #tpu.memory_space<vmem>>, vector<32x64xf32>
    %cst_8 = arith.constant dense<0.000000e+00> : vector<32x512xf32>
    %9 = tpu.matmul %8, %7, %cst_8 {dimension_numbers = #tpu.dot_dimension_numbers<[1], [0], [0], [1], [0, 0, 1, 1], [], []>} : vector<32x64xf32>, vector<64x512xf32>, vector<32x512xf32> -> vector<32x512xf32>
    %c0_9 = arith.constant 0 : index
    %c0_10 = arith.constant 0 : index
    %10 = vector.load %arg5[%c0_9, %c0_10] : memref<32x1xf32, #tpu.memory_space<vmem>>, vector<32x1xf32>
    %11 = vector.broadcast %10 : vector<32x1xf32> to vector<32x512xf32>
    %12 = arith.addf %9, %11 : vector<32x512xf32>
    %cst_11 = arith.constant 0.000000e+00 : f32
    %13 = vector.broadcast %cst_11 : f32 to vector<32x512xf32>
    %14 = arith.maximumf %12, %13 : vector<32x512xf32>
    %c0_12 = arith.constant 0 : index
    %c0_13 = arith.constant 0 : index
    %15 = vector.load %arg6[%c0_12, %c0_13] : memref<16x32xf32, #tpu.memory_space<vmem>>, vector<16x32xf32>
    %cst_14 = arith.constant dense<0.000000e+00> : vector<16x512xf32>
    %16 = tpu.matmul %15, %14, %cst_14 {dimension_numbers = #tpu.dot_dimension_numbers<[1], [0], [0], [1], [0, 0, 1, 1], [], []>} : vector<16x32xf32>, vector<32x512xf32>, vector<16x512xf32> -> vector<16x512xf32>
    %c0_15 = arith.constant 0 : index
    %c0_16 = arith.constant 0 : index
    %17 = vector.load %arg7[%c0_15, %c0_16] : memref<16x1xf32, #tpu.memory_space<vmem>>, vector<16x1xf32>
    %18 = vector.broadcast %17 : vector<16x1xf32> to vector<16x512xf32>
    %19 = arith.addf %16, %18 : vector<16x512xf32>
    %cst_17 = arith.constant 0.000000e+00 : f32
    %20 = vector.broadcast %cst_17 : f32 to vector<16x512xf32>
    %21 = arith.maximumf %19, %20 : vector<16x512xf32>
    %c0_18 = arith.constant 0 : index
    %c0_19 = arith.constant 0 : index
    %22 = vector.load %arg8[%c0_18, %c0_19] : memref<1x16xf32, #tpu.memory_space<vmem>>, vector<1x16xf32>
    %cst_20 = arith.constant dense<0.000000e+00> : vector<1x512xf32>
    %23 = tpu.matmul %22, %21, %cst_20 {dimension_numbers = #tpu.dot_dimension_numbers<[1], [0], [0], [1], [0, 0, 1, 1], [], []>} : vector<1x16xf32>, vector<16x512xf32>, vector<1x512xf32> -> vector<1x512xf32>
    %c0_21 = arith.constant 0 : index
    %c0_22 = arith.constant 0 : index
    %24 = vector.load %arg9[%c0_21, %c0_22] : memref<1x1xf32, #tpu.memory_space<vmem>>, vector<1x1xf32>
    %25 = vector.broadcast %24 : vector<1x1xf32> to vector<1x512xf32>
    %26 = arith.addf %23, %25 : vector<1x512xf32>
    %27 = arith.negf %26 : vector<1x512xf32>
    %28 = math.exp %27 : vector<1x512xf32>
    %cst_23 = arith.constant 1.000000e+00 : f32
    %29 = vector.broadcast %cst_23 : f32 to vector<1x512xf32>
    %30 = arith.addf %29, %28 : vector<1x512xf32>
    %31 = arith.divf %29, %30 : vector<1x512xf32>
    %c0_24 = arith.constant 0 : index
    %c0_25 = arith.constant 0 : index
    %32 = vector.load %arg10[%c0_24, %c0_25] : memref<1x512xf32, #tpu.memory_space<vmem>>, vector<1x512xf32>
    tpu.vector_store %arg10[%c0_24, %c0_25], %31 {strides = array<i32>} : memref<1x512xf32, #tpu.memory_space<vmem>>, vector<1x512xf32>,
    return
  }
  func.func @transform_0(%arg0: i32) -> (i32, i32) {
    %c0_i32 = arith.constant 0 : i32
    %c0_i32_0 = arith.constant 0 : i32
    return %c0_i32, %arg0 : i32, i32
  }
  func.func @transform_1(%arg0: i32) -> (i32, i32) {
    %c0_i32 = arith.constant 0 : i32
    %c0_i32_0 = arith.constant 0 : i32
    %c0_i32_1 = arith.constant 0 : i32
    return %c0_i32, %c0_i32_0 : i32, i32
  }
  func.func @transform_2(%arg0: i32) -> (i32, i32) {
    %c0_i32 = arith.constant 0 : i32
    %c0_i32_0 = arith.constant 0 : i32
    %c0_i32_1 = arith.constant 0 : i32
    return %c0_i32, %c0_i32_0 : i32, i32
  }
  func.func @transform_3(%arg0: i32) -> (i32, i32) {
    %c0_i32 = arith.constant 0 : i32
    %c0_i32_0 = arith.constant 0 : i32
    %c0_i32_1 = arith.constant 0 : i32
    return %c0_i32, %c0_i32_0 : i32, i32
  }
  func.func @transform_4(%arg0: i32) -> (i32, i32) {
    %c0_i32 = arith.constant 0 : i32
    %c0_i32_0 = arith.constant 0 : i32
    %c0_i32_1 = arith.constant 0 : i32
    return %c0_i32, %c0_i32_0 : i32, i32
  }
  func.func @transform_5(%arg0: i32) -> (i32, i32) {
    %c0_i32 = arith.constant 0 : i32
    %c0_i32_0 = arith.constant 0 : i32
    %c0_i32_1 = arith.constant 0 : i32
    return %c0_i32, %c0_i32_0 : i32, i32
  }
  func.func @transform_6(%arg0: i32) -> (i32, i32) {
    %c0_i32 = arith.constant 0 : i32
    %c0_i32_0 = arith.constant 0 : i32
    %c0_i32_1 = arith.constant 0 : i32
    return %c0_i32, %c0_i32_0 : i32, i32
  }
  func.func @transform_7(%arg0: i32) -> (i32, i32) {
    %c0_i32 = arith.constant 0 : i32
    %c0_i32_0 = arith.constant 0 : i32
    %c0_i32_1 = arith.constant 0 : i32
    return %c0_i32, %c0_i32_0 : i32, i32
  }
  func.func @transform_8(%arg0: i32) -> (i32, i32) {
    %c0_i32 = arith.constant 0 : i32
    %c0_i32_0 = arith.constant 0 : i32
    %c0_i32_1 = arith.constant 0 : i32
    return %c0_i32, %c0_i32_0 : i32, i32
  }
  func.func @transform_9(%arg0: i32) -> (i32, i32) {
    %c0_i32 = arith.constant 0 : i32
    %c0_i32_0 = arith.constant 0 : i32
    return %c0_i32, %arg0 : i32, i32
  }
}

</mosaic_0001>

<llo_original>
// kernel: tpu_custom_call.1
$region0: #{tpu_custom_call.1}
  #allocation0 [shape = 'u32[]', space=smem, size = 0x4, offset = 0x4, fixed_abs, tag = 'smem constant byte address 0x4 - core index']
  #allocation1 [shape = 'u32[144,128]{1,0:T(1,128)}', space=vmem, size = 0x12000, scoped, tag = 'internal scratch']
  #allocation2 [shape = 'f32[1,1]{1,0:T(1,128)S(1)}', space=vmem, size = 0x200, scoped, tag = 'scoped memory for tpu_custom_call.1']
  %s0 = inlined_call_operand.vmem [shape: f32[32,512], index: 0, kind: input, shape index: {}]
  %s1 = inlined_call_operand.vmem [shape: f32[64,32], index: 1, kind: input, shape index: {}]
  %s2 = inlined_call_operand.vmem [shape: f32[64,1], index: 2, kind: input, shape index: {}]
  %s3 = inlined_call_operand.vmem [shape: f32[32,64], index: 3, kind: input, shape index: {}]
  %s4 = inlined_call_operand.vmem [shape: f32[32,1], index: 4, kind: input, shape index: {}]
  %s5 = inlined_call_operand.vmem [shape: f32[16,32], index: 5, kind: input, shape index: {}]
  %s6 = inlined_call_operand.vmem [shape: f32[16,1], index: 6, kind: input, shape index: {}]
  %s7 = inlined_call_operand.vmem [shape: f32[1,16], index: 7, kind: input, shape index: {}]
  %s8 = inlined_call_operand.<no memory space> [shape: f32[1,1], index: 8, kind: input, shape index: {}]
  %s9 = inlined_call_operand.hbm [shape: f32[1,512], index: 9, kind: output, shape index: {}]
  %s10 = sld [smem:[#allocation0]]
  $region46: #{tpu_custom_call.1} parent=0
    _
  %s12 = ssub.s32 1, %s10
  %s13 = scalar_select 0, %s12, %s10
  %v14 = vstv %s8
  %15 = vst [vmem:[#allocation2] sm:$0x1] %v14
  $region1: #{tpu_custom_call.1} parent=0
    #allocation3 [shape = 'u8[2048]{0}', space=vmem, size = 0x800, scoped, tag = 'output window, operand 0, single buffered']
    #allocation4 [shape = 's32[1]{0}', space=sflag, size = 0x4, scoped, tag = 'scoped memory for tpu_custom_call.1']
    %16 = vsyncpa [#allocation4], 0
    // Predicated region
    $region2: #{tpu_custom_call.1} parent=1 // pred_check
      _
    $region3: #{tpu_custom_call.1} parent=1 // pred_check_branch
      %18 = sbr.rel (0) target = $region5
    $region4: #{tpu_custom_call.1} parent=1 // pred_region
      _
    $region5: #{tpu_custom_call.1} parent=1 // pred_fallthru
      _
    // Predicated region
    $region6: #{tpu_custom_call.1} parent=1 // pred_check
      _
    $region7: #{tpu_custom_call.1} parent=1 // pred_check_branch
      %20 = sbr.rel (0) target = $region9
    $region8: #{tpu_custom_call.1} parent=1 // pred_region
      _
    $region9: #{tpu_custom_call.1} parent=1 // pred_fallthru
      _
    // Predicated region
    $region10: #{tpu_custom_call.1} parent=1 // pred_check
      _
    $region11: #{tpu_custom_call.1} parent=1 // pred_check_branch
      %22 = sbr.rel (0) target = $region13
    $region12: #{tpu_custom_call.1} parent=1 // pred_region
      _
    $region13: #{tpu_custom_call.1} parent=1 // pred_fallthru
      _
    // Predicated region
    $region14: #{tpu_custom_call.1} parent=1 // pred_check
      _
    $region15: #{tpu_custom_call.1} parent=1 // pred_check_branch
      %24 = sbr.rel (0) target = $region17
    $region16: #{tpu_custom_call.1} parent=1 // pred_region
      _
    $region17: #{tpu_custom_call.1} parent=1 // pred_fallthru
      _
    // Predicated region
    $region18: #{tpu_custom_call.1} parent=1 // pred_check
      _
    $region19: #{tpu_custom_call.1} parent=1 // pred_check_branch
      %26 = sbr.rel (0) target = $region21
    $region20: #{tpu_custom_call.1} parent=1 // pred_region
      _
    $region21: #{tpu_custom_call.1} parent=1 // pred_fallthru
      _
    // Predicated region
    $region22: #{tpu_custom_call.1} parent=1 // pred_check
      _
    $region23: #{tpu_custom_call.1} parent=1 // pred_check_branch
      %28 = sbr.rel (0) target = $region25
    $region24: #{tpu_custom_call.1} parent=1 // pred_region
      _
    $region25: #{tpu_custom_call.1} parent=1 // pred_fallthru
      _
    // Predicated region
    $region26: #{tpu_custom_call.1} parent=1 // pred_check
      _
    $region27: #{tpu_custom_call.1} parent=1 // pred_check_branch
      %30 = sbr.rel (0) target = $region29
    $region28: #{tpu_custom_call.1} parent=1 // pred_region
      _
    $region29: #{tpu_custom_call.1} parent=1 // pred_fallthru
      _
    // Predicated region
    $region30: #{tpu_custom_call.1} parent=1 // pred_check
      _
    $region31: #{tpu_custom_call.1} parent=1 // pred_check_branch
      %32 = sbr.rel (0) target = $region33
    $region32: #{tpu_custom_call.1} parent=1 // pred_region
      _
    $region33: #{tpu_custom_call.1} parent=1 // pred_fallthru
      _
    // Predicated region
    $region34: #{tpu_custom_call.1} parent=1 // pred_check
      _
    $region35: #{tpu_custom_call.1} parent=1 // pred_check_branch
      %34 = sbr.rel (0) target = $region37
    $region36: #{tpu_custom_call.1} parent=1 // pred_region
      _
    $region37: #{tpu_custom_call.1} parent=1 // pred_fallthru
      _
    %v35 = vld [vmem:[%s1] sm:$0xff]
    %v36 = vld [vmem:[%s1 + $0x8] sm:$0xff]
    %v37 = vld [vmem:[%s1 + $0x10] sm:$0xff]
    %v38 = vld [vmem:[%s1 + $0x18] sm:$0xff]
    %v39 = vld [vmem:[%s1 + $0x20] sm:$0xff]
    %v40 = vld [vmem:[%s1 + $0x28] sm:$0xff]
    %v41 = vld [vmem:[%s1 + $0x30] sm:$0xff]
    %v42 = vld [vmem:[%s1 + $0x38] sm:$0xff]
    %v43 = vld [vmem:[%s0] sm:$0xff]
    %v44 = vld [vmem:[%s0 + $0x8] sm:$0xff]
    %v45 = vld [vmem:[%s0 + $0x10] sm:$0xff]
    %v46 = vld [vmem:[%s0 + $0x18] sm:$0xff]
    %v47 = vld [vmem:[%s0 + $0x20] sm:$0xff]
    %v48 = vld [vmem:[%s0 + $0x28] sm:$0xff]
    %v49 = vld [vmem:[%s0 + $0x30] sm:$0xff]
    %v50 = vld [vmem:[%s0 + $0x38] sm:$0xff]
    %v51 = vld [vmem:[%s0 + $0x40] sm:$0xff]
    %v52 = vld [vmem:[%s0 + $0x48] sm:$0xff]
    %v53 = vld [vmem:[%s0 + $0x50] sm:$0xff]
    %v54 = vld [vmem:[%s0 + $0x58] sm:$0xff]
    %v55 = vld [vmem:[%s0 + $0x60] sm:$0xff]
    %v56 = vld [vmem:[%s0 + $0x68] sm:$0xff]
    %v57 = vld [vmem:[%s0 + $0x70] sm:$0xff]
    %v58 = vld [vmem:[%s0 + $0x78] sm:$0xff]
    %v59 = vld [vmem:[%s2] sm:$0xff]
    %v60 = vld [vmem:[%s2 + $0x8] sm:$0xff]
    %v61 = vld [vmem:[%s2 + $0x10] sm:$0xff]
    %v62 = vld [vmem:[%s2 + $0x18] sm:$0xff]
    %v63 = vld [vmem:[%s2 + $0x20] sm:$0xff]
    %v64 = vld [vmem:[%s2 + $0x28] sm:$0xff]
    %v65 = vld [vmem:[%s2 + $0x30] sm:$0xff]
    %v66 = vld [vmem:[%s2 + $0x38] sm:$0xff]
    %68 = vset.pattern.permute.xlu0 0
    %69 = vperm.xlu0 %68, %v59
    %v70 = vpop.permute.xlu0 %69
    %73 = vset.pattern.permute.xlu0 0
    %74 = vperm.xlu0 %73, %v60
    %v75 = vpop.permute.xlu0 %74
    %78 = vset.pattern.permute.xlu0 0
    %79 = vperm.xlu0 %78, %v61
    %v80 = vpop.permute.xlu0 %79
    %83 = vset.pattern.permute.xlu0 0
    %84 = vperm.xlu0 %83, %v62
    %v85 = vpop.permute.xlu0 %84
    %88 = vset.pattern.permute.xlu0 0
    %89 = vperm.xlu0 %88, %v63
    %v90 = vpop.permute.xlu0 %89
    %93 = vset.pattern.permute.xlu0 0
    %94 = vperm.xlu0 %93, %v64
    %v95 = vpop.permute.xlu0 %94
    %98 = vset.pattern.permute.xlu0 0
    %99 = vperm.xlu0 %98, %v65
    %v100 = vpop.permute.xlu0 %99
    %103 = vset.pattern.permute.xlu0 0
    %104 = vperm.xlu0 %103, %v66
    %v105 = vpop.permute.xlu0 %104
    %vm107 = vcmask 261120
    %v109 = vsel %vm107, %v35, 0
    %v112 = vsel %vm107, %v36, 0
    %v115 = vsel %vm107, %v37, 0
    %v118 = vsel %vm107, %v38, 0
    %v121 = vsel %vm107, %v39, 0
    %v124 = vsel %vm107, %v40, 0
    %v127 = vsel %vm107, %v41, 0
    %v130 = vsel %vm107, %v42, 0
    %132 = vmatprep.subr.mxu0 0.0
    %133 = vmatpush1.msra.mxu0 0.0
    %134 = vmatprep.subr.mxu0 0.0
    %135 = vmatpush1.msra.mxu0 0.0
    %136 = vmatprep.subr.mxu0 0.0
    %137 = vmatpush1.msra.mxu0 0.0
    %138 = vmatprep.subr.mxu0 0.0
    %139 = vmatpush1.msra.mxu0 0.0
    %140 = vmatprep.subr.mxu0 0.0
    %141 = vmatpush1.msra.mxu0 0.0
    %142 = vmatprep.subr.mxu0 0.0
    %143 = vmatpush1.msra.mxu0 0.0
    %144 = vmatprep.subr.mxu0 0.0
    %145 = vmatpush1.msra.mxu0 0.0
    %146 = vmatprep.subr.mxu0 0.0
    %147 = vmatpush1.msra.mxu0 0.0
    %148 = vmatprep.subr.mxu0 0.0
    %149 = vmatpush1.msra.mxu0 0.0
    %150 = vmatprep.subr.mxu0 0.0
    %151 = vmatpush1.msra.mxu0 0.0
    %152 = vmatprep.subr.mxu0 0.0
    %153 = vmatpush1.msra.mxu0 0.0
    %154 = vmatprep.subr.mxu0 0.0
    %155 = vmatpush1.msra.mxu0 0.0
    %156 = vmatprep.subr.mxu0 %v56
    %157 = vmatpush1.msra.mxu0 %v55
    %158 = vmatprep.subr.mxu0 %v52
    %159 = vmatpush1.msra.mxu0 %v51
    %160 = vmatprep.subr.mxu0 %v48
    %161 = vmatpush1.msra.mxu0 %v47
    %162 = vmatprep.subr.mxu0 %v44
    %163 = vmatpush1.msra.mxu0 %v43
    %164 = vmatprep.subr.mxu0 0.0
    %165 = vmatpush2.msra.mxu0 0.0
    %166 = vmatprep.subr.mxu0 0.0
    %167 = vmatpush2.msra.mxu0 0.0
    %168 = vmatprep.subr.mxu0 0.0
    %169 = vmatpush2.msra.mxu0 0.0
    %170 = vmatprep.subr.mxu0 0.0
    %171 = vmatpush2.msra.mxu0 0.0
    %172 = vmatprep.subr.mxu0 0.0
    %173 = vmatpush2.msra.mxu0 0.0
    %174 = vmatprep.subr.mxu0 0.0
    %175 = vmatpush2.msra.mxu0 0.0
    %176 = vmatprep.subr.mxu0 0.0
    %177 = vmatpush2.msra.mxu0 0.0
    %178 = vmatprep.subr.mxu0 0.0
    %179 = vmatpush2.msra.mxu0 0.0
    %180 = vmatprep.subr.mxu0 0.0
    %181 = vmatpush2.msra.mxu0 0.0
    %182 = vmatprep.subr.mxu0 0.0
    %183 = vmatpush2.msra.mxu0 0.0
    %184 = vmatprep.subr.mxu0 0.0
    %185 = vmatpush2.msra.mxu0 0.0
    %186 = vmatprep.subr.mxu0 0.0
    %187 = vmatpush2.msra.mxu0 0.0
    %188 = vmatprep.subr.mxu0 0.0
    %189 = vmatpush2.msra.mxu0 0.0
    %190 = vmatprep.subr.mxu0 0.0
    %191 = vmatpush2.msra.mxu0 0.0
    %192 = vmatprep.subr.mxu0 0.0
    %193 = vmatpush2.msra.mxu0 0.0
    %194 = vmatprep.subr.mxu0 0.0
    %195 = vmatpush2.msra.mxu0 0.0
    %196 = vmatprep.mubr.f32.mxu0 0.0
    %197 = vmatmul.mubr.f32.gmra.mxu0 %v109
    %v198 = vpop.f32.mrf.mxu0
    %v199 = vadd.f32 %v70, %v198
    %v200 = vpop.f32.mrf.mxu0
    %v201 = vadd.f32 %v70, %v200
    %202 = vmatprep.mubr.f32.mxu0 0.0
    %203 = vmatmul.mubr.f32.gmra.mxu0 %v112
    %v204 = vpop.f32.mrf.mxu0
    %v205 = vadd.f32 %v75, %v204
    %v206 = vpop.f32.mrf.mxu0
    %v207 = vadd.f32 %v75, %v206
    %208 = vmatprep.mubr.f32.mxu0 0.0
    %209 = vmatmul.mubr.f32.gmra.mxu0 %v115
    %v210 = vpop.f32.mrf.mxu0
    %v211 = vadd.f32 %v80, %v210
    %v212 = vpop.f32.mrf.mxu0
    %v213 = vadd.f32 %v80, %v212
    %214 = vmatprep.mubr.f32.mxu0 0.0
    %215 = vmatmul.mubr.f32.gmra.mxu0 %v118
    %v216 = vpop.f32.mrf.mxu0
    %v217 = vadd.f32 %v85, %v216
    %v218 = vpop.f32.mrf.mxu0
    %v219 = vadd.f32 %v85, %v218
    %220 = vmatprep.mubr.f32.mxu0 0.0
    %221 = vmatmul.mubr.f32.gmra.mxu0 %v121
    %v222 = vpop.f32.mrf.mxu0
    %v223 = vadd.f32 %v90, %v222
    %v224 = vpop.f32.mrf.mxu0
    %v225 = vadd.f32 %v90, %v224
    %226 = vmatprep.mubr.f32.mxu0 0.0
    %227 = vmatmul.mubr.f32.gmra.mxu0 %v124
    %v228 = vpop.f32.mrf.mxu0
    %v229 = vadd.f32 %v95, %v228
    %v230 = vpop.f32.mrf.mxu0
    %v231 = vadd.f32 %v95, %v230
    %232 = vmatprep.mubr.f32.mxu0 0.0
    %233 = vmatmul.mubr.f32.gmra.mxu0 %v127
    %v234 = vpop.f32.mrf.mxu0
    %v235 = vadd.f32 %v100, %v234
    %v236 = vpop.f32.mrf.mxu0
    %v237 = vadd.f32 %v100, %v236
    %238 = vmatprep.mubr.f32.mxu0 0.0
    %239 = vmatmul.mubr.f32.gmra.mxu0 %v130
    %v240 = vpop.f32.mrf.mxu0
    %v241 = vadd.f32 %v105, %v240
    %v242 = vpop.f32.mrf.mxu0
    %v243 = vadd.f32 %v105, %v242
    %244 = vdwg.mxu0
    %245 = vmatprep.subr.mxu0 0.0
    %246 = vmatpush1.msra.mxu0 0.0
    %247 = vmatprep.subr.mxu0 0.0
    %248 = vmatpush1.msra.mxu0 0.0
    %249 = vmatprep.subr.mxu0 0.0
    %250 = vmatpush1.msra.mxu0 0.0
    %251 = vmatprep.subr.mxu0 0.0
    %252 = vmatpush1.msra.mxu0 0.0
    %253 = vmatprep.subr.mxu0 0.0
    %254 = vmatpush1.msra.mxu0 0.0
    %255 = vmatprep.subr.mxu0 0.0
    %256 = vmatpush1.msra.mxu0 0.0
    %257 = vmatprep.subr.mxu0 0.0
    %258 = vmatpush1.msra.mxu0 0.0
    %259 = vmatprep.subr.mxu0 0.0
    %260 = vmatpush1.msra.mxu0 0.0
    %261 = vmatprep.subr.mxu0 0.0
    %262 = vmatpush1.msra.mxu0 0.0
    %263 = vmatprep.subr.mxu0 0.0
    %264 = vmatpush1.msra.mxu0 0.0
    %265 = vmatprep.subr.mxu0 0.0
    %266 = vmatpush1.msra.mxu0 0.0
    %267 = vmatprep.subr.mxu0 0.0
    %268 = vmatpush1.msra.mxu0 0.0
    %269 = vmatprep.subr.mxu0 %v58
    %270 = vmatpush1.msra.mxu0 %v57
    %271 = vmatprep.subr.mxu0 %v54
    %272 = vmatpush1.msra.mxu0 %v53
    %273 = vmatprep.subr.mxu0 %v50
    %274 = vmatpush1.msra.mxu0 %v49
    %275 = vmatprep.subr.mxu0 %v46
    %276 = vmatpush1.msra.mxu0 %v45
    %277 = vmatprep.subr.mxu0 0.0
    %278 = vmatpush2.msra.mxu0 0.0
    %279 = vmatprep.subr.mxu0 0.0
    %280 = vmatpush2.msra.mxu0 0.0
    %281 = vmatprep.subr.mxu0 0.0
    %282 = vmatpush2.msra.mxu0 0.0
    %283 = vmatprep.subr.mxu0 0.0
    %284 = vmatpush2.msra.mxu0 0.0
    %285 = vmatprep.subr.mxu0 0.0
    %286 = vmatpush2.msra.mxu0 0.0
    %287 = vmatprep.subr.mxu0 0.0
    %288 = vmatpush2.msra.mxu0 0.0
    %289 = vmatprep.subr.mxu0 0.0
    %290 = vmatpush2.msra.mxu0 0.0
    %291 = vmatprep.subr.mxu0 0.0
    %292 = vmatpush2.msra.mxu0 0.0
    %293 = vmatprep.subr.mxu0 0.0
    %294 = vmatpush2.msra.mxu0 0.0
    %295 = vmatprep.subr.mxu0 0.0
    %296 = vmatpush2.msra.mxu0 0.0
    %297 = vmatprep.subr.mxu0 0.0
    %298 = vmatpush2.msra.mxu0 0.0
    %299 = vmatprep.subr.mxu0 0.0
    %300 = vmatpush2.msra.mxu0 0.0
    %301 = vmatprep.subr.mxu0 0.0
    %302 = vmatpush2.msra.mxu0 0.0
    %303 = vmatprep.subr.mxu0 0.0
    %304 = vmatpush2.msra.mxu0 0.0
    %305 = vmatprep.subr.mxu0 0.0
    %306 = vmatpush2.msra.mxu0 0.0
    %307 = vmatprep.subr.mxu0 0.0
    %308 = vmatpush2.msra.mxu0 0.0
    %309 = vmatprep.mubr.f32.mxu0 0.0
    %310 = vmatmul.mubr.f32.gmra.mxu0 %v109
    %v311 = vpop.f32.mrf.mxu0
    %v312 = vadd.f32 %v70, %v311
    %v313 = vpop.f32.mrf.mxu0
    %v314 = vadd.f32 %v70, %v313
    %315 = vmatprep.mubr.f32.mxu0 0.0
    %316 = vmatmul.mubr.f32.gmra.mxu0 %v112
    %v317 = vpop.f32.mrf.mxu0
    %v318 = vadd.f32 %v75, %v317
    %v319 = vpop.f32.mrf.mxu0
    %v320 = vadd.f32 %v75, %v319
    %321 = vmatprep.mubr.f32.mxu0 0.0
    %322 = vmatmul.mubr.f32.gmra.mxu0 %v115
    %v323 = vpop.f32.mrf.mxu0
    %v324 = vadd.f32 %v80, %v323
    %v325 = vpop.f32.mrf.mxu0
    %v326 = vadd.f32 %v80, %v325
    %327 = vmatprep.mubr.f32.mxu0 0.0
    %328 = vmatmul.mubr.f32.gmra.mxu0 %v118
    %v329 = vpop.f32.mrf.mxu0
    %v330 = vadd.f32 %v85, %v329
    %v331 = vpop.f32.mrf.mxu0
    %v332 = vadd.f32 %v85, %v331
    %333 = vmatprep.mubr.f32.mxu0 0.0
    %334 = vmatmul.mubr.f32.gmra.mxu0 %v121
    %v335 = vpop.f32.mrf.mxu0
    %v336 = vadd.f32 %v90, %v335
    %v337 = vpop.f32.mrf.mxu0
    %v338 = vadd.f32 %v90, %v337
    %339 = vmatprep.mubr.f32.mxu0 0.0
    %340 = vmatmul.mubr.f32.gmra.mxu0 %v124
    %v341 = vpop.f32.mrf.mxu0
    %v342 = vadd.f32 %v95, %v341
    %v343 = vpop.f32.mrf.mxu0
    %v344 = vadd.f32 %v95, %v343
    %345 = vmatprep.mubr.f32.mxu0 0.0
    %346 = vmatmul.mubr.f32.gmra.mxu0 %v127
    %v347 = vpop.f32.mrf.mxu0
    %v348 = vadd.f32 %v100, %v347
    %v349 = vpop.f32.mrf.mxu0
    %v350 = vadd.f32 %v100, %v349
    %351 = vmatprep.mubr.f32.mxu0 0.0
    %352 = vmatmul.mubr.f32.gmra.mxu0 %v130
    %v353 = vpop.f32.mrf.mxu0
    %v354 = vadd.f32 %v105, %v353
    %v355 = vpop.f32.mrf.mxu0
    %v356 = vadd.f32 %v105, %v355
    %357 = vdwg.mxu0
    %v358 = vmax.f32 %v199, 0.0
    %v359 = vmax.f32 %v201, 0.0
    %v360 = vmax.f32 %v312, 0.0
    %v361 = vmax.f32 %v314, 0.0
    %v362 = vmax.f32 %v205, 0.0
    %v363 = vmax.f32 %v207, 0.0
    %v364 = vmax.f32 %v318, 0.0
    %v365 = vmax.f32 %v320, 0.0
    %v366 = vmax.f32 %v211, 0.0
    %v367 = vmax.f32 %v213, 0.0
    %v368 = vmax.f32 %v324, 0.0
    %v369 = vmax.f32 %v326, 0.0
    %v370 = vmax.f32 %v217, 0.0
    %v371 = vmax.f32 %v219, 0.0
    %v372 = vmax.f32 %v330, 0.0
    %v373 = vmax.f32 %v332, 0.0
    %v374 = vmax.f32 %v223, 0.0
    %v375 = vmax.f32 %v225, 0.0
    %v376 = vmax.f32 %v336, 0.0
    %v377 = vmax.f32 %v338, 0.0
    %v378 = vmax.f32 %v229, 0.0
    %v379 = vmax.f32 %v231, 0.0
    %v380 = vmax.f32 %v342, 0.0
    %v381 = vmax.f32 %v344, 0.0
    %v382 = vmax.f32 %v235, 0.0
    %v383 = vmax.f32 %v237, 0.0
    %v384 = vmax.f32 %v348, 0.0
    %v385 = vmax.f32 %v350, 0.0
    %v386 = vmax.f32 %v241, 0.0
    %v387 = vmax.f32 %v243, 0.0
    %v388 = vmax.f32 %v354, 0.0
    %v389 = vmax.f32 %v356, 0.0
    %v390 = vld [vmem:[%s3] sm:$0xff]
    %v391 = vld [vmem:[%s3 + $0x8] sm:$0xff]
    %v392 = vld [vmem:[%s3 + $0x10] sm:$0xff]
    %v393 = vld [vmem:[%s3 + $0x18] sm:$0xff]
    %v394 = vld [vmem:[%s4] sm:$0xff]
    %v395 = vld [vmem:[%s4 + $0x8] sm:$0xff]
    %v396 = vld [vmem:[%s4 + $0x10] sm:$0xff]
    %v397 = vld [vmem:[%s4 + $0x18] sm:$0xff]
    %399 = vset.pattern.permute.xlu0 0
    %400 = vperm.xlu0 %399, %v394
    %v401 = vpop.permute.xlu0 %400
    %404 = vset.pattern.permute.xlu0 0
    %405 = vperm.xlu0 %404, %v395
    %v406 = vpop.permute.xlu0 %405
    %409 = vset.pattern.permute.xlu0 0
    %410 = vperm.xlu0 %409, %v396
    %v411 = vpop.permute.xlu0 %410
    %414 = vset.pattern.permute.xlu0 0
    %415 = vperm.xlu0 %414, %v397
    %v416 = vpop.permute.xlu0 %415
    %vm418 = vcmask 523264
    %v420 = vsel %vm418, %v390, 0
    %v423 = vsel %vm418, %v391, 0
    %v426 = vsel %vm418, %v392, 0
    %v429 = vsel %vm418, %v393, 0
    %431 = vmatprep.subr.mxu0 0.0
    %432 = vmatpush1.msra.mxu0 0.0
    %433 = vmatprep.subr.mxu0 0.0
    %434 = vmatpush1.msra.mxu0 0.0
    %435 = vmatprep.subr.mxu0 0.0
    %436 = vmatpush1.msra.mxu0 0.0
    %437 = vmatprep.subr.mxu0 0.0
    %438 = vmatpush1.msra.mxu0 0.0
    %439 = vmatprep.subr.mxu0 0.0
    %440 = vmatpush1.msra.mxu0 0.0
    %441 = vmatprep.subr.mxu0 0.0
    %442 = vmatpush1.msra.mxu0 0.0
    %443 = vmatprep.subr.mxu0 0.0
    %444 = vmatpush1.msra.mxu0 0.0
    %445 = vmatprep.subr.mxu0 0.0
    %446 = vmatpush1.msra.mxu0 0.0
    %447 = vmatprep.subr.mxu0 %v387
    %448 = vmatpush1.msra.mxu0 %v386
    %449 = vmatprep.subr.mxu0 %v383
    %450 = vmatpush1.msra.mxu0 %v382
    %451 = vmatprep.subr.mxu0 %v379
    %452 = vmatpush1.msra.mxu0 %v378
    %453 = vmatprep.subr.mxu0 %v375
    %454 = vmatpush1.msra.mxu0 %v374
    %455 = vmatprep.subr.mxu0 %v371
    %456 = vmatpush1.msra.mxu0 %v370
    %457 = vmatprep.subr.mxu0 %v367
    %458 = vmatpush1.msra.mxu0 %v366
    %459 = vmatprep.subr.mxu0 %v363
    %460 = vmatpush1.msra.mxu0 %v362
    %461 = vmatprep.subr.mxu0 %v359
    %462 = vmatpush1.msra.mxu0 %v358
    %463 = vmatprep.subr.mxu0 0.0
    %464 = vmatpush2.msra.mxu0 0.0
    %465 = vmatprep.subr.mxu0 0.0
    %466 = vmatpush2.msra.mxu0 0.0
    %467 = vmatprep.subr.mxu0 0.0
    %468 = vmatpush2.msra.mxu0 0.0
    %469 = vmatprep.subr.mxu0 0.0
    %470 = vmatpush2.msra.mxu0 0.0
    %471 = vmatprep.subr.mxu0 0.0
    %472 = vmatpush2.msra.mxu0 0.0
    %473 = vmatprep.subr.mxu0 0.0
    %474 = vmatpush2.msra.mxu0 0.0
    %475 = vmatprep.subr.mxu0 0.0
    %476 = vmatpush2.msra.mxu0 0.0
    %477 = vmatprep.subr.mxu0 0.0
    %478 = vmatpush2.msra.mxu0 0.0
    %479 = vmatprep.subr.mxu0 0.0
    %480 = vmatpush2.msra.mxu0 0.0
    %481 = vmatprep.subr.mxu0 0.0
    %482 = vmatpush2.msra.mxu0 0.0
    %483 = vmatprep.subr.mxu0 0.0
    %484 = vmatpush2.msra.mxu0 0.0
    %485 = vmatprep.subr.mxu0 0.0
    %486 = vmatpush2.msra.mxu0 0.0
    %487 = vmatprep.subr.mxu0 0.0
    %488 = vmatpush2.msra.mxu0 0.0
    %489 = vmatprep.subr.mxu0 0.0
    %490 = vmatpush2.msra.mxu0 0.0
    %491 = vmatprep.subr.mxu0 0.0
    %492 = vmatpush2.msra.mxu0 0.0
    %493 = vmatprep.subr.mxu0 0.0
    %494 = vmatpush2.msra.mxu0 0.0
    %495 = vmatprep.mubr.f32.mxu0 0.0
    %496 = vmatmul.mubr.f32.gmra.mxu0 %v420
    %v497 = vpop.f32.mrf.mxu0
    %v498 = vadd.f32 %v401, %v497
    %v499 = vpop.f32.mrf.mxu0
    %v500 = vadd.f32 %v401, %v499
    %501 = vmatprep.mubr.f32.mxu0 0.0
    %502 = vmatmul.mubr.f32.gmra.mxu0 %v423
    %v503 = vpop.f32.mrf.mxu0
    %v504 = vadd.f32 %v406, %v503
    %v505 = vpop.f32.mrf.mxu0
    %v506 = vadd.f32 %v406, %v505
    %507 = vmatprep.mubr.f32.mxu0 0.0
    %508 = vmatmul.mubr.f32.gmra.mxu0 %v426
    %v509 = vpop.f32.mrf.mxu0
    %v510 = vadd.f32 %v411, %v509
    %v511 = vpop.f32.mrf.mxu0
    %v512 = vadd.f32 %v411, %v511
    %513 = vmatprep.mubr.f32.mxu0 0.0
    %514 = vmatmul.mubr.f32.gmra.mxu0 %v429
    %v515 = vpop.f32.mrf.mxu0
    %v516 = vadd.f32 %v416, %v515
    %v517 = vpop.f32.mrf.mxu0
    %v518 = vadd.f32 %v416, %v517
    %519 = vdwg.mxu0
    %520 = vmatprep.subr.mxu0 0.0
    %521 = vmatpush1.msra.mxu0 0.0
    %522 = vmatprep.subr.mxu0 0.0
    %523 = vmatpush1.msra.mxu0 0.0
    %524 = vmatprep.subr.mxu0 0.0
    %525 = vmatpush1.msra.mxu0 0.0
    %526 = vmatprep.subr.mxu0 0.0
    %527 = vmatpush1.msra.mxu0 0.0
    %528 = vmatprep.subr.mxu0 0.0
    %529 = vmatpush1.msra.mxu0 0.0
    %530 = vmatprep.subr.mxu0 0.0
    %531 = vmatpush1.msra.mxu0 0.0
    %532 = vmatprep.subr.mxu0 0.0
    %533 = vmatpush1.msra.mxu0 0.0
    %534 = vmatprep.subr.mxu0 0.0
    %535 = vmatpush1.msra.mxu0 0.0
    %536 = vmatprep.subr.mxu0 %v389
    %537 = vmatpush1.msra.mxu0 %v388
    %538 = vmatprep.subr.mxu0 %v385
    %539 = vmatpush1.msra.mxu0 %v384
    %540 = vmatprep.subr.mxu0 %v381
    %541 = vmatpush1.msra.mxu0 %v380
    %542 = vmatprep.subr.mxu0 %v377
    %543 = vmatpush1.msra.mxu0 %v376
    %544 = vmatprep.subr.mxu0 %v373
    %545 = vmatpush1.msra.mxu0 %v372
    %546 = vmatprep.subr.mxu0 %v369
    %547 = vmatpush1.msra.mxu0 %v368
    %548 = vmatprep.subr.mxu0 %v365
    %549 = vmatpush1.msra.mxu0 %v364
    %550 = vmatprep.subr.mxu0 %v361
    %551 = vmatpush1.msra.mxu0 %v360
    %552 = vmatprep.subr.mxu0 0.0
    %553 = vmatpush2.msra.mxu0 0.0
    %554 = vmatprep.subr.mxu0 0.0
    %555 = vmatpush2.msra.mxu0 0.0
    %556 = vmatprep.subr.mxu0 0.0
    %557 = vmatpush2.msra.mxu0 0.0
    %558 = vmatprep.subr.mxu0 0.0
    %559 = vmatpush2.msra.mxu0 0.0
    %560 = vmatprep.subr.mxu0 0.0
    %561 = vmatpush2.msra.mxu0 0.0
    %562 = vmatprep.subr.mxu0 0.0
    %563 = vmatpush2.msra.mxu0 0.0
    %564 = vmatprep.subr.mxu0 0.0
    %565 = vmatpush2.msra.mxu0 0.0
    %566 = vmatprep.subr.mxu0 0.0
    %567 = vmatpush2.msra.mxu0 0.0
    %568 = vmatprep.subr.mxu0 0.0
    %569 = vmatpush2.msra.mxu0 0.0
    %570 = vmatprep.subr.mxu0 0.0
    %571 = vmatpush2.msra.mxu0 0.0
    %572 = vmatprep.subr.mxu0 0.0
    %573 = vmatpush2.msra.mxu0 0.0
    %574 = vmatprep.subr.mxu0 0.0
    %575 = vmatpush2.msra.mxu0 0.0
    %576 = vmatprep.subr.mxu0 0.0
    %577 = vmatpush2.msra.mxu0 0.0
    %578 = vmatprep.subr.mxu0 0.0
    %579 = vmatpush2.msra.mxu0 0.0
    %580 = vmatprep.subr.mxu0 0.0
    %581 = vmatpush2.msra.mxu0 0.0
    %582 = vmatprep.subr.mxu0 0.0
    %583 = vmatpush2.msra.mxu0 0.0
    %584 = vmatprep.mubr.f32.mxu0 0.0
    %585 = vmatmul.mubr.f32.gmra.mxu0 %v420
    %v586 = vpop.f32.mrf.mxu0
    %v587 = vadd.f32 %v401, %v586
    %v588 = vpop.f32.mrf.mxu0
    %v589 = vadd.f32 %v401, %v588
    %590 = vmatprep.mubr.f32.mxu0 0.0
    %591 = vmatmul.mubr.f32.gmra.mxu0 %v423
    %v592 = vpop.f32.mrf.mxu0
    %v593 = vadd.f32 %v406, %v592
    %v594 = vpop.f32.mrf.mxu0
    %v595 = vadd.f32 %v406, %v594
    %596 = vmatprep.mubr.f32.mxu0 0.0
    %597 = vmatmul.mubr.f32.gmra.mxu0 %v426
    %v598 = vpop.f32.mrf.mxu0
    %v599 = vadd.f32 %v411, %v598
    %v600 = vpop.f32.mrf.mxu0
    %v601 = vadd.f32 %v411, %v600
    %602 = vmatprep.mubr.f32.mxu0 0.0
    %603 = vmatmul.mubr.f32.gmra.mxu0 %v429
    %v604 = vpop.f32.mrf.mxu0
    %v605 = vadd.f32 %v416, %v604
    %v606 = vpop.f32.mrf.mxu0
    %v607 = vadd.f32 %v416, %v606
    %608 = vdwg.mxu0
    %v609 = vmax.f32 %v498, 0.0
    %v610 = vmax.f32 %v500, 0.0
    %v611 = vmax.f32 %v587, 0.0
    %v612 = vmax.f32 %v589, 0.0
    %v613 = vmax.f32 %v504, 0.0
    %v614 = vmax.f32 %v506, 0.0
    %v615 = vmax.f32 %v593, 0.0
    %v616 = vmax.f32 %v595, 0.0
    %v617 = vmax.f32 %v510, 0.0
    %v618 = vmax.f32 %v512, 0.0
    %v619 = vmax.f32 %v599, 0.0
    %v620 = vmax.f32 %v601, 0.0
    %v621 = vmax.f32 %v516, 0.0
    %v622 = vmax.f32 %v518, 0.0
    %v623 = vmax.f32 %v605, 0.0
    %v624 = vmax.f32 %v607, 0.0
    %v625 = vld [vmem:[%s5] sm:$0xff]
    %v626 = vld [vmem:[%s5 + $0x8] sm:$0xff]
    %v627 = vld [vmem:[%s6] sm:$0xff]
    %v628 = vld [vmem:[%s6 + $0x8] sm:$0xff]
    %630 = vset.pattern.permute.xlu0 0
    %631 = vperm.xlu0 %630, %v627
    %v632 = vpop.permute.xlu0 %631
    %635 = vset.pattern.permute.xlu0 0
    %636 = vperm.xlu0 %635, %v628
    %v637 = vpop.permute.xlu0 %636
    %v640 = vsel %vm107, %v625, 0
    %v643 = vsel %vm107, %v626, 0
    %645 = vmatprep.subr.mxu0 0.0
    %646 = vmatpush1.msra.mxu0 0.0
    %647 = vmatprep.subr.mxu0 0.0
    %648 = vmatpush1.msra.mxu0 0.0
    %649 = vmatprep.subr.mxu0 0.0
    %650 = vmatpush1.msra.mxu0 0.0
    %651 = vmatprep.subr.mxu0 0.0
    %652 = vmatpush1.msra.mxu0 0.0
    %653 = vmatprep.subr.mxu0 0.0
    %654 = vmatpush1.msra.mxu0 0.0
    %655 = vmatprep.subr.mxu0 0.0
    %656 = vmatpush1.msra.mxu0 0.0
    %657 = vmatprep.subr.mxu0 0.0
    %658 = vmatpush1.msra.mxu0 0.0
    %659 = vmatprep.subr.mxu0 0.0
    %660 = vmatpush1.msra.mxu0 0.0
    %661 = vmatprep.subr.mxu0 0.0
    %662 = vmatpush1.msra.mxu0 0.0
    %663 = vmatprep.subr.mxu0 0.0
    %664 = vmatpush1.msra.mxu0 0.0
    %665 = vmatprep.subr.mxu0 0.0
    %666 = vmatpush1.msra.mxu0 0.0
    %667 = vmatprep.subr.mxu0 0.0
    %668 = vmatpush1.msra.mxu0 0.0
    %669 = vmatprep.subr.mxu0 %v622
    %670 = vmatpush1.msra.mxu0 %v621
    %671 = vmatprep.subr.mxu0 %v618
    %672 = vmatpush1.msra.mxu0 %v617
    %673 = vmatprep.subr.mxu0 %v614
    %674 = vmatpush1.msra.mxu0 %v613
    %675 = vmatprep.subr.mxu0 %v610
    %676 = vmatpush1.msra.mxu0 %v609
    %677 = vmatprep.subr.mxu0 0.0
    %678 = vmatpush2.msra.mxu0 0.0
    %679 = vmatprep.subr.mxu0 0.0
    %680 = vmatpush2.msra.mxu0 0.0
    %681 = vmatprep.subr.mxu0 0.0
    %682 = vmatpush2.msra.mxu0 0.0
    %683 = vmatprep.subr.mxu0 0.0
    %684 = vmatpush2.msra.mxu0 0.0
    %685 = vmatprep.subr.mxu0 0.0
    %686 = vmatpush2.msra.mxu0 0.0
    %687 = vmatprep.subr.mxu0 0.0
    %688 = vmatpush2.msra.mxu0 0.0
    %689 = vmatprep.subr.mxu0 0.0
    %690 = vmatpush2.msra.mxu0 0.0
    %691 = vmatprep.subr.mxu0 0.0
    %692 = vmatpush2.msra.mxu0 0.0
    %693 = vmatprep.subr.mxu0 0.0
    %694 = vmatpush2.msra.mxu0 0.0
    %695 = vmatprep.subr.mxu0 0.0
    %696 = vmatpush2.msra.mxu0 0.0
    %697 = vmatprep.subr.mxu0 0.0
    %698 = vmatpush2.msra.mxu0 0.0
    %699 = vmatprep.subr.mxu0 0.0
    %700 = vmatpush2.msra.mxu0 0.0
    %701 = vmatprep.subr.mxu0 0.0
    %702 = vmatpush2.msra.mxu0 0.0
    %703 = vmatprep.subr.mxu0 0.0
    %704 = vmatpush2.msra.mxu0 0.0
    %705 = vmatprep.subr.mxu0 0.0
    %706 = vmatpush2.msra.mxu0 0.0
    %707 = vmatprep.subr.mxu0 0.0
    %708 = vmatpush2.msra.mxu0 0.0
    %709 = vmatprep.mubr.f32.mxu0 0.0
    %710 = vmatmul.mubr.f32.gmra.mxu0 %v640
    %v711 = vpop.f32.mrf.mxu0
    %v712 = vadd.f32 %v632, %v711
    %v713 = vpop.f32.mrf.mxu0
    %v714 = vadd.f32 %v632, %v713
    %715 = vmatprep.mubr.f32.mxu0 0.0
    %716 = vmatmul.mubr.f32.gmra.mxu0 %v643
    %v717 = vpop.f32.mrf.mxu0
    %v718 = vadd.f32 %v637, %v717
    %v719 = vpop.f32.mrf.mxu0
    %v720 = vadd.f32 %v637, %v719
    %721 = vdwg.mxu0
    %722 = vmatprep.subr.mxu0 0.0
    %723 = vmatpush1.msra.mxu0 0.0
    %724 = vmatprep.subr.mxu0 0.0
    %725 = vmatpush1.msra.mxu0 0.0
    %726 = vmatprep.subr.mxu0 0.0
    %727 = vmatpush1.msra.mxu0 0.0
    %728 = vmatprep.subr.mxu0 0.0
    %729 = vmatpush1.msra.mxu0 0.0
    %730 = vmatprep.subr.mxu0 0.0
    %731 = vmatpush1.msra.mxu0 0.0
    %732 = vmatprep.subr.mxu0 0.0
    %733 = vmatpush1.msra.mxu0 0.0
    %734 = vmatprep.subr.mxu0 0.0
    %735 = vmatpush1.msra.mxu0 0.0
    %736 = vmatprep.subr.mxu0 0.0
    %737 = vmatpush1.msra.mxu0 0.0
    %738 = vmatprep.subr.mxu0 0.0
    %739 = vmatpush1.msra.mxu0 0.0
    %740 = vmatprep.subr.mxu0 0.0
    %741 = vmatpush1.msra.mxu0 0.0
    %742 = vmatprep.subr.mxu0 0.0
    %743 = vmatpush1.msra.mxu0 0.0
    %744 = vmatprep.subr.mxu0 0.0
    %745 = vmatpush1.msra.mxu0 0.0
    %746 = vmatprep.subr.mxu0 %v624
    %747 = vmatpush1.msra.mxu0 %v623
    %748 = vmatprep.subr.mxu0 %v620
    %749 = vmatpush1.msra.mxu0 %v619
    %750 = vmatprep.subr.mxu0 %v616
    %751 = vmatpush1.msra.mxu0 %v615
    %752 = vmatprep.subr.mxu0 %v612
    %753 = vmatpush1.msra.mxu0 %v611
    %754 = vmatprep.subr.mxu0 0.0
    %755 = vmatpush2.msra.mxu0 0.0
    %756 = vmatprep.subr.mxu0 0.0
    %757 = vmatpush2.msra.mxu0 0.0
    %758 = vmatprep.subr.mxu0 0.0
    %759 = vmatpush2.msra.mxu0 0.0
    %760 = vmatprep.subr.mxu0 0.0
    %761 = vmatpush2.msra.mxu0 0.0
    %762 = vmatprep.subr.mxu0 0.0
    %763 = vmatpush2.msra.mxu0 0.0
    %764 = vmatprep.subr.mxu0 0.0
    %765 = vmatpush2.msra.mxu0 0.0
    %766 = vmatprep.subr.mxu0 0.0
    %767 = vmatpush2.msra.mxu0 0.0
    %768 = vmatprep.subr.mxu0 0.0
    %769 = vmatpush2.msra.mxu0 0.0
    %770 = vmatprep.subr.mxu0 0.0
    %771 = vmatpush2.msra.mxu0 0.0
    %772 = vmatprep.subr.mxu0 0.0
    %773 = vmatpush2.msra.mxu0 0.0
    %774 = vmatprep.subr.mxu0 0.0
    %775 = vmatpush2.msra.mxu0 0.0
    %776 = vmatprep.subr.mxu0 0.0
    %777 = vmatpush2.msra.mxu0 0.0
    %778 = vmatprep.subr.mxu0 0.0
    %779 = vmatpush2.msra.mxu0 0.0
    %780 = vmatprep.subr.mxu0 0.0
    %781 = vmatpush2.msra.mxu0 0.0
    %782 = vmatprep.subr.mxu0 0.0
    %783 = vmatpush2.msra.mxu0 0.0
    %784 = vmatprep.subr.mxu0 0.0
    %785 = vmatpush2.msra.mxu0 0.0
    %786 = vmatprep.mubr.f32.mxu0 0.0
    %787 = vmatmul.mubr.f32.gmra.mxu0 %v640
    %v788 = vpop.f32.mrf.mxu0
    %v789 = vadd.f32 %v632, %v788
    %v790 = vpop.f32.mrf.mxu0
    %v791 = vadd.f32 %v632, %v790
    %792 = vmatprep.mubr.f32.mxu0 0.0
    %793 = vmatmul.mubr.f32.gmra.mxu0 %v643
    %v794 = vpop.f32.mrf.mxu0
    %v795 = vadd.f32 %v637, %v794
    %v796 = vpop.f32.mrf.mxu0
    %v797 = vadd.f32 %v637, %v796
    %798 = vdwg.mxu0
    %v799 = vmax.f32 %v712, 0.0
    %v800 = vmax.f32 %v714, 0.0
    %v801 = vmax.f32 %v789, 0.0
    %v802 = vmax.f32 %v791, 0.0
    %v803 = vmax.f32 %v718, 0.0
    %v804 = vmax.f32 %v720, 0.0
    %v805 = vmax.f32 %v795, 0.0
    %v806 = vmax.f32 %v797, 0.0
    %v807 = vld [vmem:[%s7] sm:$0x1]
    %v808 = vld [vmem:[#allocation2] sm:$0x1]
    %810 = vset.pattern.permute.xlu0 0
    %811 = vperm.xlu0 %810, %v808
    %v812 = vpop.permute.xlu0 %811
    %v814 = vlaneseq
    %v815 = vshrl.u32 %v814, 7
    %v816 = vsub.s32 0, %v815
    %v817 = vrot.slane %v812, %v816
    %vm818 = vcmask 130048
    %v820 = vsel %vm818, %v807, 0
    %822 = vmatprep.subr.mxu0 0.0
    %823 = vmatpush1.msra.mxu0 0.0
    %824 = vmatprep.subr.mxu0 0.0
    %825 = vmatpush1.msra.mxu0 0.0
    %826 = vmatprep.subr.mxu0 0.0
    %827 = vmatpush1.msra.mxu0 0.0
    %828 = vmatprep.subr.mxu0 0.0
    %829 = vmatpush1.msra.mxu0 0.0
    %830 = vmatprep.subr.mxu0 0.0
    %831 = vmatpush1.msra.mxu0 0.0
    %832 = vmatprep.subr.mxu0 0.0
    %833 = vmatpush1.msra.mxu0 0.0
    %834 = vmatprep.subr.mxu0 0.0
    %835 = vmatpush1.msra.mxu0 0.0
    %836 = vmatprep.subr.mxu0 0.0
    %837 = vmatpush1.msra.mxu0 0.0
    %838 = vmatprep.subr.mxu0 0.0
    %839 = vmatpush1.msra.mxu0 0.0
    %840 = vmatprep.subr.mxu0 0.0
    %841 = vmatpush1.msra.mxu0 0.0
    %842 = vmatprep.subr.mxu0 0.0
    %843 = vmatpush1.msra.mxu0 0.0
    %844 = vmatprep.subr.mxu0 0.0
    %845 = vmatpush1.msra.mxu0 0.0
    %846 = vmatprep.subr.mxu0 0.0
    %847 = vmatpush1.msra.mxu0 0.0
    %848 = vmatprep.subr.mxu0 0.0
    %849 = vmatpush1.msra.mxu0 0.0
    %850 = vmatprep.subr.mxu0 %v804
    %851 = vmatpush1.msra.mxu0 %v803
    %852 = vmatprep.subr.mxu0 %v800
    %853 = vmatpush1.msra.mxu0 %v799
    %854 = vmatprep.subr.mxu0 0.0
    %855 = vmatpush2.msra.mxu0 0.0
    %856 = vmatprep.subr.mxu0 0.0
    %857 = vmatpush2.msra.mxu0 0.0
    %858 = vmatprep.subr.mxu0 0.0
    %859 = vmatpush2.msra.mxu0 0.0
    %860 = vmatprep.subr.mxu0 0.0
    %861 = vmatpush2.msra.mxu0 0.0
    %862 = vmatprep.subr.mxu0 0.0
    %863 = vmatpush2.msra.mxu0 0.0
    %864 = vmatprep.subr.mxu0 0.0
    %865 = vmatpush2.msra.mxu0 0.0
    %866 = vmatprep.subr.mxu0 0.0
    %867 = vmatpush2.msra.mxu0 0.0
    %868 = vmatprep.subr.mxu0 0.0
    %869 = vmatpush2.msra.mxu0 0.0
    %870 = vmatprep.subr.mxu0 0.0
    %871 = vmatpush2.msra.mxu0 0.0
    %872 = vmatprep.subr.mxu0 0.0
    %873 = vmatpush2.msra.mxu0 0.0
    %874 = vmatprep.subr.mxu0 0.0
    %875 = vmatpush2.msra.mxu0 0.0
    %876 = vmatprep.subr.mxu0 0.0
    %877 = vmatpush2.msra.mxu0 0.0
    %878 = vmatprep.subr.mxu0 0.0
    %879 = vmatpush2.msra.mxu0 0.0
    %880 = vmatprep.subr.mxu0 0.0
    %881 = vmatpush2.msra.mxu0 0.0
    %882 = vmatprep.subr.mxu0 0.0
    %883 = vmatpush2.msra.mxu0 0.0
    %884 = vmatprep.subr.mxu0 0.0
    %885 = vmatpush2.msra.mxu0 0.0
    %886 = vmatprep.mubr.f32.mxu0 0.0
    %887 = vmatmul.mubr.f32.gmra.mxu0 %v820
    %v888 = vpop.f32.mrf.mxu0
    %v889 = vadd.f32 %v817, %v888
    %v890 = vpop.f32.mrf.mxu0
    %v891 = vadd.f32 %v817, %v890
    %892 = vdwg.mxu0
    %893 = vmatprep.subr.mxu0 0.0
    %894 = vmatpush1.msra.mxu0 0.0
    %895 = vmatprep.subr.mxu0 0.0
    %896 = vmatpush1.msra.mxu0 0.0
    %897 = vmatprep.subr.mxu0 0.0
    %898 = vmatpush1.msra.mxu0 0.0
    %899 = vmatprep.subr.mxu0 0.0
    %900 = vmatpush1.msra.mxu0 0.0
    %901 = vmatprep.subr.mxu0 0.0
    %902 = vmatpush1.msra.mxu0 0.0
    %903 = vmatprep.subr.mxu0 0.0
    %904 = vmatpush1.msra.mxu0 0.0
    %905 = vmatprep.subr.mxu0 0.0
    %906 = vmatpush1.msra.mxu0 0.0
    %907 = vmatprep.subr.mxu0 0.0
    %908 = vmatpush1.msra.mxu0 0.0
    %909 = vmatprep.subr.mxu0 0.0
    %910 = vmatpush1.msra.mxu0 0.0
    %911 = vmatprep.subr.mxu0 0.0
    %912 = vmatpush1.msra.mxu0 0.0
    %913 = vmatprep.subr.mxu0 0.0
    %914 = vmatpush1.msra.mxu0 0.0
    %915 = vmatprep.subr.mxu0 0.0
    %916 = vmatpush1.msra.mxu0 0.0
    %917 = vmatprep.subr.mxu0 0.0
    %918 = vmatpush1.msra.mxu0 0.0
    %919 = vmatprep.subr.mxu0 0.0
    %920 = vmatpush1.msra.mxu0 0.0
    %921 = vmatprep.subr.mxu0 %v806
    %922 = vmatpush1.msra.mxu0 %v805
    %923 = vmatprep.subr.mxu0 %v802
    %924 = vmatpush1.msra.mxu0 %v801
    %925 = vmatprep.subr.mxu0 0.0
    %926 = vmatpush2.msra.mxu0 0.0
    %927 = vmatprep.subr.mxu0 0.0
    %928 = vmatpush2.msra.mxu0 0.0
    %929 = vmatprep.subr.mxu0 0.0
    %930 = vmatpush2.msra.mxu0 0.0
    %931 = vmatprep.subr.mxu0 0.0
    %932 = vmatpush2.msra.mxu0 0.0
    %933 = vmatprep.subr.mxu0 0.0
    %934 = vmatpush2.msra.mxu0 0.0
    %935 = vmatprep.subr.mxu0 0.0
    %936 = vmatpush2.msra.mxu0 0.0
    %937 = vmatprep.subr.mxu0 0.0
    %938 = vmatpush2.msra.mxu0 0.0
    %939 = vmatprep.subr.mxu0 0.0
    %940 = vmatpush2.msra.mxu0 0.0
    %941 = vmatprep.subr.mxu0 0.0
    %942 = vmatpush2.msra.mxu0 0.0
    %943 = vmatprep.subr.mxu0 0.0
    %944 = vmatpush2.msra.mxu0 0.0
    %945 = vmatprep.subr.mxu0 0.0
    %946 = vmatpush2.msra.mxu0 0.0
    %947 = vmatprep.subr.mxu0 0.0
    %948 = vmatpush2.msra.mxu0 0.0
    %949 = vmatprep.subr.mxu0 0.0
    %950 = vmatpush2.msra.mxu0 0.0
    %951 = vmatprep.subr.mxu0 0.0
    %952 = vmatpush2.msra.mxu0 0.0
    %953 = vmatprep.subr.mxu0 0.0
    %954 = vmatpush2.msra.mxu0 0.0
    %955 = vmatprep.subr.mxu0 0.0
    %956 = vmatpush2.msra.mxu0 0.0
    %957 = vmatprep.mubr.f32.mxu0 0.0
    %958 = vmatmul.mubr.f32.gmra.mxu0 %v820
    %v959 = vpop.f32.mrf.mxu0
    %v960 = vadd.f32 %v817, %v959
    %v961 = vpop.f32.mrf.mxu0
    %v962 = vadd.f32 %v817, %v961
    %963 = vdwg.mxu0
    %v964 = vxor.u32 %v889, 2147483648
    %v965 = vxor.u32 %v891, 2147483648
    %v966 = vxor.u32 %v960, 2147483648
    %v967 = vxor.u32 %v962, 2147483648
    %v968 = vmul.f32 %v964, 1.442695
    %v969 = vpow.pop %v968
    %v970 = vmul.f32 %v965, 1.442695
    %v971 = vpow.pop %v970
    %v972 = vmul.f32 %v966, 1.442695
    %v973 = vpow.pop %v972
    %v974 = vmul.f32 %v967, 1.442695
    %v975 = vpow.pop %v974
    %v976 = vadd.f32 %v969, 1.0
    %v977 = vadd.f32 %v971, 1.0
    %v978 = vadd.f32 %v973, 1.0
    %v979 = vadd.f32 %v975, 1.0
    %v980 = vrcp.pop %v976
    %v981 = vmul.f32 1.0, %v980
    %v982 = vrcp.pop %v977
    %v983 = vmul.f32 1.0, %v982
    %v984 = vrcp.pop %v978
    %v985 = vmul.f32 1.0, %v984
    %v986 = vrcp.pop %v979
    %v987 = vmul.f32 1.0, %v986
    %v992 = vcombine.low %v981, %v983
    %v993 = vcombine.low %v985, %v987
    %v995 = vunpack.c.l.s4 1966171168
    %v996 = vunpack.c.0.s8 %v995
    %v997 = vlaneseq
    %v998 = vshrl.u32 %v997, 7
    %v999 = vsub.s32 %v996, %v998
    %v1000 = vrot.slane %v992, %v999
    %v1002 = vunpack.c.l.s4 1966171168
    %v1003 = vunpack.c.0.s8 %v1002
    %v1004 = vlaneseq
    %v1005 = vshrl.u32 %v1004, 7
    %v1006 = vsub.s32 %v1003, %v1005
    %v1007 = vrot.slane %v993, %v1006
    %v1008 = vcombine.low %v1000, %v1007
    %v1010 = vunpack.c.l.s4 1966171168
    %v1011 = vunpack.c.0.s8 %v1010
    %v1012 = vlaneseq
    %v1013 = vshrl.u32 %v1012, 7
    %v1014 = vsub.s32 %v1011, %v1013
    %v1015 = vrot.slane %v1008, %v1014
    %v1017 = vlaneseq
    %vm1018 = vcmp.ge.s32.totalorder %v1017, 0
    %vm1019 = vcmp.lt.s32.totalorder %v1017, 512
    %vm1020 = vmand %vm1018, %vm1019
    %1021 = vst.msk [vmem:[#allocation3] sm:$0xf] %vm1020, %v1015
    // Predicated region
    $region38: #{tpu_custom_call.1} parent=1 // pred_check
      _
    $region39: #{tpu_custom_call.1} parent=1 // pred_check_branch
      %1023 = sbr.rel (0) target = $region41
    $region40: #{tpu_custom_call.1} parent=1 // pred_region
      %s1025 = ssub.s32 64, 64
      %1026 = vsyncadd [#allocation4], %s1025
      %s1028 = sshll.u32 [#allocation3], 4
      %s1029 = int_to_ptr.vmem [resolvable:$true] %s1028
      %1031 = dma.vmem_to_hbm [thread:$0]  %s1029, 64, %s9, [#allocation4]
    $region41: #{tpu_custom_call.1} parent=1 // pred_fallthru
      _
    // Predicated region
    $region42: #{tpu_custom_call.1} parent=1 // pred_check
      _
    $region43: #{tpu_custom_call.1} parent=1 // pred_check_branch
      %1033 = sbr.rel (0) target = $region45
    $region44: #{tpu_custom_call.1} parent=1 // pred_region
      %1034 = dma.done [#allocation4], 64
    $region45: #{tpu_custom_call.1} parent=1 // pred_fallthru
      _
    %1035 = vsyncpa [#allocation4], 1

</llo_original>
